<compile_context>
chip_gen: v5e
topology: v5e:2x2
jax: 0.10.0
libtpu: 0.0.40
codegen_flags: <defaults>
</compile_context>

<pallas_src>
import jax
import jax.numpy as jnp
from jax.experimental import pallas as pl
from jax.experimental.pallas import tpu as pltpu

HID = 64  # MLPBase hidden size (output_size == 64)


# ----------------------------------------------------------------------------
# Pallas kernel: one batch tile, fully fused forward pass.
# ----------------------------------------------------------------------------
def _mlp_base_kernel(x_ref, w1_ref, b1_ref, w2_ref, b2_ref, clw_ref, clb_ref,
                     out_ref):
    cdt = w1_ref.dtype                       # MXU compute dtype (bf16 or f32)
    x = x_ref[...].astype(cdt)

    # Layer 1 (actor | critic fused): (TB, num_inputs) @ (num_inputs, 128),
    # f32 accumulate; bias add + tanh in f32 (EUP).
    h1 = jnp.tanh(
        jnp.dot(x, w1_ref[...], preferred_element_type=jnp.float32) + b1_ref[...]
    )
    # Layer 2 (block-diagonal so branches stay independent): (TB,128)@(128,128)
    h2 = jnp.tanh(
        jnp.dot(h1.astype(cdt), w2_ref[...],
                preferred_element_type=jnp.float32) + b2_ref[...]
    )
    # h2 lanes [0, 64)  -> hidden_actor ; lanes [64, 128) -> hidden_critic

    # critic_linear as VPU mul + cross-lane reduce (clw is zero on actor lanes),
    # avoiding an N=1 MXU matmul and a 1-lane masked store.  clw kept f32.
    value = jnp.sum(h2 * clw_ref[...], axis=-1, keepdims=True) + clb_ref[...]

    # Pack lane-dense output: lanes < 64 carry hidden_actor, lanes >= 64 carry
    # the (broadcast) value.  Single unmasked (TB, 128) store.
    lanes = jax.lax.broadcasted_iota(jnp.int32, h2.shape, dimension=1)
    packed = jnp.where(lanes < HID, h2, value)
    out_ref[...] = packed.astype(out_ref.dtype)


# ----------------------------------------------------------------------------
# One-time parameter fusion (run when params change, NOT per forward call).
# ----------------------------------------------------------------------------
def fuse_params(params, compute_dtype=jnp.bfloat16):
    f32 = jnp.float32
    w1 = jnp.concatenate([params["aw1"], params["cw1"]], axis=1)         # (in, 128)
    b1 = jnp.concatenate([params["ab1"], params["cb1"]], axis=1)         # (1, 128)
    w2 = jnp.zeros((2 * HID, 2 * HID), f32)
    w2 = w2.at[:HID, :HID].set(params["aw2"])                            # actor block
    w2 = w2.at[HID:, HID:].set(params["cw2"])                            # critic block
    b2 = jnp.concatenate([params["ab2"], params["cb2"]], axis=1)         # (1, 128)
    clw = jnp.concatenate([jnp.zeros((1, HID), f32), params["clw"].T],
                          axis=1)                                        # (1, 128)
    clb = params["clb"]                                                  # (1, 1)
    return {
        "w1": w1.astype(compute_dtype),
        "b1": b1.astype(f32),
        "w2": w2.astype(compute_dtype),
        "b2": b2.astype(f32),
        "clw": clw.astype(f32),
        "clb": clb.astype(f32),
        "compute_dtype": jnp.dtype(compute_dtype),
    }


# ----------------------------------------------------------------------------
# Tile selection: multiple of 8, and >=2 grid steps for mid/large B so the
# parallel axis can shard across the 2 TensorCores on v7x.
# ----------------------------------------------------------------------------
def _round_up(x, m):
    return ((x + m - 1) // m) * m


def _pick_tile(B, block_b):
    if B <= 16:
        return B                                   # single full-dim block
    return max(8, min(block_b, _round_up(pl.cdiv(B, 2), 8)))


# ----------------------------------------------------------------------------
# Forward wrapper
# ----------------------------------------------------------------------------
def mlp_base_forward(inputs, states, masks, fused, *, block_b=2048,
                     return_packed=False):
    """Forward pass of MLPBase.

    Returns (critic_value (B,1), hidden_actor (B,64), states) as f32, matching
    the PyTorch module.  `masks` is unused by MLPBase.forward (only the
    recurrent variant consumes it) and is kept for signature parity.
    With return_packed=True the raw (B, 128) lane-dense slab is returned
    instead, avoiding the extra slicing pass for fused consumers.
    """
    B, num_inputs = inputs.shape
    cdt = fused["compute_dtype"]
    out_dtype = jnp.bfloat16 if cdt == jnp.bfloat16 else jnp.float32
    out_bytes = jnp.dtype(out_dtype).itemsize
    cd_bytes = jnp.dtype(cdt).itemsize

    TB = _pick_tile(B, block_b)
    grid = (pl.cdiv(B, TB),)

    x_spec = pl.BlockSpec((TB, num_inputs), lambda i: (i, 0))
    out_spec = pl.BlockSpec((TB, 2 * HID), lambda i: (i, 0))

    def resident(shape):
        # Weights/biases: same block every grid step -> stay VMEM-resident.
        return pl.BlockSpec(shape, lambda i: (0, 0))

    # ---- VMEM budget (double-buffered x/out tiles + weights + f32 temps) ----
    weight_bytes = ((num_inputs + 2 * HID) * 2 * HID * cd_bytes
                    + 4 * 2 * HID * 4 + 4)
    per_step = (2 * TB * num_inputs * inputs.dtype.itemsize   # x (double-buffered)
                + 2 * TB * 2 * HID * out_bytes                # out (double-buffered)
                + weight_bytes
                + 4 * TB * 2 * HID * 4)                       # f32 intermediates
    vmem_limit = int(min(max(2 * per_step, 16 << 20), 48 << 20))

    # ---- scheduler hint -----------------------------------------------------
    flops = 2 * B * (num_inputs * 2 * HID + (2 * HID) * (2 * HID)) + 2 * B * 2 * HID
    cost = pl.CostEstimate(
        flops=flops,
        transcendentals=2 * B * 2 * HID,
        bytes_accessed=B * (num_inputs * inputs.dtype.itemsize
                            + 2 * HID * out_bytes) + weight_bytes,
    )

    packed = pl.pallas_call(
        _mlp_base_kernel,
        out_shape=jax.ShapeDtypeStruct((B, 2 * HID), out_dtype),
        grid=grid,
        in_specs=[
            x_spec,
            resident((num_inputs, 2 * HID)),   # w1
            resident((1, 2 * HID)),            # b1
            resident((2 * HID, 2 * HID)),      # w2 (block-diagonal)
            resident((1, 2 * HID)),            # b2
            resident((1, 2 * HID)),            # clw (zero-padded, f32)
            resident((1, 1)),                  # clb
        ],
        out_specs=out_spec,
        compiler_params=pltpu.CompilerParams(
            dimension_semantics=("parallel",),
            vmem_limit_bytes=vmem_limit,
        ),
        cost_estimate=cost,
    )(inputs, fused["w1"], fused["b1"], fused["w2"], fused["b2"],
      fused["clw"], fused["clb"])

    if return_packed:
        return packed, states

    hidden_actor = packed[:, :HID].astype(jnp.float32)
    value = packed[:, HID:HID + 1].astype(jnp.float32)
    return value, hidden_actor, states


# ----------------------------------------------------------------------------
# Deterministic parameter init replicating init_normc_ (row-normalized normal)
# with zero biases.  PyTorch weight is (out, in) normalized along in-dim; we
# store the transpose (in, out) so columns are unit-norm.
# ----------------------------------------------------------------------------
def _init_normc(key, in_features, out_features):
    w_pt = jax.random.normal(key, (out_features, in_features), dtype=jnp.float32)
    w_pt = w_pt / jnp.sqrt(jnp.sum(w_pt * w_pt, axis=1, keepdims=True))
    return w_pt.T  # (in, out)


def make_params(key, num_inputs, hid=HID):
    keys = jax.random.split(key, 5)
    return {
        "aw1": _init_normc(keys[0], num_inputs, hid),
        "ab1": jnp.zeros((1, hid), jnp.float32),
        "aw2": _init_normc(keys[1], hid, hid),
        "ab2": jnp.zeros((1, hid), jnp.float32),
        "cw1": _init_normc(keys[2], num_inputs, hid),
        "cb1": jnp.zeros((1, hid), jnp.float32),
        "cw2": _init_normc(keys[3], hid, hid),
        "cb2": jnp.zeros((1, hid), jnp.float32),
        "clw": _init_normc(keys[4], hid, 1),
        "clb": jnp.zeros((1, 1), jnp.float32),
    }


# ----------------------------------------------------------------------------
# Pure-JAX f32 reference for correctness checks
# ----------------------------------------------------------------------------
def _reference(inputs, states, params):
    hc = jnp.tanh(inputs @ params["cw1"] + params["cb1"])
    hc = jnp.tanh(hc @ params["cw2"] + params["cb2"])
    ha = jnp.tanh(inputs @ params["aw1"] + params["ab1"])
    ha = jnp.tanh(ha @ params["aw2"] + params["ab2"])
    value = hc @ params["clw"] + params["clb"]
    return value, ha, states


if __name__ == "__main__":
    key = jax.random.PRNGKey(0)
    k_x, k_p, k_x2 = jax.random.split(key, 3)

    num_inputs = 16
    params = make_params(k_p, num_inputs, HID)

    # One-time parameter fusion (hoisted out of the per-call path).
    fused_f32 = fuse_params(params, compute_dtype=jnp.float32)   # exact parity path
    fused_bf16 = fuse_params(params, compute_dtype=jnp.bfloat16)  # fast path

    # ---- small shape matching the module (B=2) ----
    B = 2
    inputs = jax.random.normal(k_x, (B, num_inputs), dtype=jnp.float32)
    states = jnp.zeros((B, 1), dtype=jnp.float32)   # state_size == 1
    masks = jnp.ones((B, 1), dtype=jnp.float32)

    v_ref, a_ref, _ = _reference(inputs, states, params)

    # f32 path: exact PyTorch parity.
    value, hidden_actor, states_out = mlp_base_forward(inputs, states, masks,
                                                       fused_f32)
    jax.block_until_ready((value, hidden_actor, states_out))
    assert value.shape == (B, 1)
    assert hidden_actor.shape == (B, HID)
    assert jnp.allclose(value, v_ref, atol=1e-5)
    assert jnp.allclose(hidden_actor, a_ref, atol=1e-5)

    # bf16 MXU / bf16 store path: loose tolerance (operand/store quantization).
    v_bf, a_bf, _ = mlp_base_forward(inputs, states, masks, fused_bf16)
    jax.block_until_ready((v_bf, a_bf))
    assert jnp.allclose(v_bf, v_ref, atol=1e-1)
    assert jnp.allclose(a_bf, a_ref, atol=5e-2)

    # ---- exercise the tiled / multi-block grid path (>=2 grid steps) ----
    B2 = 96
    inputs2 = jax.random.normal(k_x2, (B2, num_inputs), dtype=jnp.float32)
    states2 = jnp.zeros((B2, 1), dtype=jnp.float32)
    masks2 = jnp.ones((B2, 1), dtype=jnp.float32)
    v2_ref, a2_ref, _ = _reference(inputs2, states2, params)

    # explicit small tile -> grid=(3,)
    v2, a2, _ = mlp_base_forward(inputs2, states2, masks2, fused_f32, block_b=32)
    jax.block_until_ready((v2, a2))
    assert jnp.allclose(v2, v2_ref, atol=1e-5)
    assert jnp.allclose(a2, a2_ref, atol=1e-5)

    # default large block_b -> auto-split into 2 tiles of 48 (megacore-friendly)
    v3, a3, _ = mlp_base_forward(inputs2, states2, masks2, fused_bf16)
    jax.block_until_ready((v3, a3))
    assert jnp.allclose(v3, v2_ref, atol=1e-1)
    assert jnp.allclose(a3, a2_ref, atol=5e-2)

    print("KERNEL_OK")
</pallas_src>

<mosaic_0001>
module attributes {stable_mosaic.version = 11 : i64} {
  func.func @_mlp_base_kernel(%arg0: i32, %arg1: memref<2x16xf32, #tpu.memory_space<vmem>>, %arg2: memref<16x128xf32, #tpu.memory_space<vmem>>, %arg3: memref<1x128xf32, #tpu.memory_space<vmem>>, %arg4: memref<128x128xf32, #tpu.memory_space<vmem>>, %arg5: memref<1x128xf32, #tpu.memory_space<vmem>>, %arg6: memref<1x128xf32, #tpu.memory_space<vmem>>, %arg7: memref<1x1xf32, #tpu.memory_space<vmem>>, %arg8: memref<2x128xf32, #tpu.memory_space<vmem>>) attributes {dimension_semantics = [#tpu.dimension_semantics<parallel>], iteration_bounds = array<i64: 1>, scalar_prefetch = 0 : i64, scratch_operands = 0 : i64, tpu.core_type = #tpu.core_type<tc>, window_params = [{transform_indices = @transform_0, window_bounds = array<i64: 2, 16>}, {pipeline_mode = #tpu.pipeline_mode<synchronous>, transform_indices = @transform_1, window_bounds = array<i64: 16, 128>}, {pipeline_mode = #tpu.pipeline_mode<synchronous>, transform_indices = @transform_2, window_bounds = array<i64: 1, 128>}, {pipeline_mode = #tpu.pipeline_mode<synchronous>, transform_indices = @transform_3, window_bounds = array<i64: 128, 128>}, {pipeline_mode = #tpu.pipeline_mode<synchronous>, transform_indices = @transform_4, window_bounds = array<i64: 1, 128>}, {pipeline_mode = #tpu.pipeline_mode<synchronous>, transform_indices = @transform_5, window_bounds = array<i64: 1, 128>}, {pipeline_mode = #tpu.pipeline_mode<synchronous>, transform_indices = @transform_6, window_bounds = array<i64: 1, 1>}, {transform_indices = @transform_7, window_bounds = array<i64: 2, 128>}]} {
    %c0 = arith.constant 0 : index
    %c0_0 = arith.constant 0 : index
    %0 = vector.load %arg1[%c0, %c0_0] : memref<2x16xf32, #tpu.memory_space<vmem>>, vector<2x16xf32>
    %c0_1 = arith.constant 0 : index
    %c0_2 = arith.constant 0 : index
    %1 = vector.load %arg2[%c0_1, %c0_2] : memref<16x128xf32, #tpu.memory_space<vmem>>, vector<16x128xf32>
    %cst = arith.constant dense<0.000000e+00> : vector<2x128xf32>
    %2 = tpu.matmul %0, %1, %cst {dimension_numbers = #tpu.dot_dimension_numbers<[1], [0], [0], [1], [0, 0, 1, 1], [], []>} : vector<2x16xf32>, vector<16x128xf32>, vector<2x128xf32> -> vector<2x128xf32>
    %c0_3 = arith.constant 0 : index
    %c0_4 = arith.constant 0 : index
    %3 = vector.load %arg3[%c0_3, %c0_4] : memref<1x128xf32, #tpu.memory_space<vmem>>, vector<1x128xf32>
    %4 = vector.broadcast %3 : vector<1x128xf32> to vector<2x128xf32>
    %5 = arith.addf %2, %4 : vector<2x128xf32>
    %6 = math.tanh %5 : vector<2x128xf32>
    %c0_5 = arith.constant 0 : index
    %c0_6 = arith.constant 0 : index
    %7 = vector.load %arg4[%c0_5, %c0_6] : memref<128x128xf32, #tpu.memory_space<vmem>>, vector<128x128xf32>
    %cst_7 = arith.constant dense<0.000000e+00> : vector<2x128xf32>
    %8 = tpu.matmul %6, %7, %cst_7 {dimension_numbers = #tpu.dot_dimension_numbers<[1], [0], [0], [1], [0, 0, 1, 1], [], []>} : vector<2x128xf32>, vector<128x128xf32>, vector<2x128xf32> -> vector<2x128xf32>
    %c0_8 = arith.constant 0 : index
    %c0_9 = arith.constant 0 : index
    %9 = vector.load %arg5[%c0_8, %c0_9] : memref<1x128xf32, #tpu.memory_space<vmem>>, vector<1x128xf32>
    %10 = vector.broadcast %9 : vector<1x128xf32> to vector<2x128xf32>
    %11 = arith.addf %8, %10 : vector<2x128xf32>
    %12 = math.tanh %11 : vector<2x128xf32>
    %c0_10 = arith.constant 0 : index
    %c0_11 = arith.constant 0 : index
    %13 = vector.load %arg6[%c0_10, %c0_11] : memref<1x128xf32, #tpu.memory_space<vmem>>, vector<1x128xf32>
    %14 = vector.broadcast %13 : vector<1x128xf32> to vector<2x128xf32>
    %15 = arith.mulf %12, %14 : vector<2x128xf32>
    %cst_12 = arith.constant dense<0.000000e+00> : vector<2xf32>
    %16 = vector.multi_reduction <add>, %15, %cst_12 [1] : vector<2x128xf32> to vector<2xf32>
    %17 = vector.shape_cast %16 : vector<2xf32> to vector<2x1xf32>
    %c0_13 = arith.constant 0 : index
    %c0_14 = arith.constant 0 : index
    %18 = vector.load %arg7[%c0_13, %c0_14] : memref<1x1xf32, #tpu.memory_space<vmem>>, vector<1x1xf32>
    %19 = vector.broadcast %18 : vector<1x1xf32> to vector<2x1xf32>
    %20 = arith.addf %17, %19 : vector<2x1xf32>
    %21 = tpu.iota {dimensions = array<i32: 1>} : vector<2x128xi32>
    %c64_i32 = arith.constant 64 : i32
    %22 = vector.broadcast %c64_i32 : i32 to vector<2x128xi32>
    %23 = arith.cmpi slt, %21, %22 : vector<2x128xi32>
    %24 = vector.shape_cast %20 : vector<2x1xf32> to vector<2x1xf32>
    %25 = vector.broadcast %24 : vector<2x1xf32> to vector<2x128xf32>
    %26 = arith.select %23, %12, %25 : vector<2x128xi1>, vector<2x128xf32>
    %c0_15 = arith.constant 0 : index
    %c0_16 = arith.constant 0 : index
    %27 = vector.load %arg8[%c0_15, %c0_16] : memref<2x128xf32, #tpu.memory_space<vmem>>, vector<2x128xf32>
    tpu.vector_store %arg8[%c0_15, %c0_16], %26 {strides = array<i32>} : memref<2x128xf32, #tpu.memory_space<vmem>>, vector<2x128xf32>,
    return
  }
  func.func @transform_0(%arg0: i32) -> (i32, i32) {
    %c0_i32 = arith.constant 0 : i32
    %c0_i32_0 = arith.constant 0 : i32
    return %arg0, %c0_i32 : i32, i32
  }
  func.func @transform_1(%arg0: i32) -> (i32, i32) {
    %c0_i32 = arith.constant 0 : i32
    %c0_i32_0 = arith.constant 0 : i32
    %c0_i32_1 = arith.constant 0 : i32
    return %c0_i32, %c0_i32_0 : i32, i32
  }
  func.func @transform_2(%arg0: i32) -> (i32, i32) {
    %c0_i32 = arith.constant 0 : i32
    %c0_i32_0 = arith.constant 0 : i32
    %c0_i32_1 = arith.constant 0 : i32
    return %c0_i32, %c0_i32_0 : i32, i32
  }
  func.func @transform_3(%arg0: i32) -> (i32, i32) {
    %c0_i32 = arith.constant 0 : i32
    %c0_i32_0 = arith.constant 0 : i32
    %c0_i32_1 = arith.constant 0 : i32
    return %c0_i32, %c0_i32_0 : i32, i32
  }
  func.func @transform_4(%arg0: i32) -> (i32, i32) {
    %c0_i32 = arith.constant 0 : i32
    %c0_i32_0 = arith.constant 0 : i32
    %c0_i32_1 = arith.constant 0 : i32
    return %c0_i32, %c0_i32_0 : i32, i32
  }
  func.func @transform_5(%arg0: i32) -> (i32, i32) {
    %c0_i32 = arith.constant 0 : i32
    %c0_i32_0 = arith.constant 0 : i32
    %c0_i32_1 = arith.constant 0 : i32
    return %c0_i32, %c0_i32_0 : i32, i32
  }
  func.func @transform_6(%arg0: i32) -> (i32, i32) {
    %c0_i32 = arith.constant 0 : i32
    %c0_i32_0 = arith.constant 0 : i32
    %c0_i32_1 = arith.constant 0 : i32
    return %c0_i32, %c0_i32_0 : i32, i32
  }
  func.func @transform_7(%arg0: i32) -> (i32, i32) {
    %c0_i32 = arith.constant 0 : i32
    %c0_i32_0 = arith.constant 0 : i32
    return %arg0, %c0_i32 : i32, i32
  }
}

</mosaic_0001>

<llo_original>
// kernel: tpu_custom_call.1
$region0: #{tpu_custom_call.1}
  #allocation0 [shape = 'u32[]', space=smem, size = 0x4, offset = 0x4, fixed_abs, tag = 'smem constant byte address 0x4 - core index']
  #allocation1 [shape = 'u32[72,128]{1,0:T(1,128)}', space=vmem, size = 0x9000, scoped, tag = 'internal scratch']
  #allocation2 [shape = 'f32[1,1]{1,0:T(1,128)S(1)}', space=vmem, size = 0x200, scoped, tag = 'scoped memory for tpu_custom_call.1']
  %s0 = inlined_call_operand.vmem [shape: f32[2,16], index: 0, kind: input, shape index: {}]
  %s1 = inlined_call_operand.hbm [shape: f32[16,128], index: 1, kind: input, shape index: {}]
  %s2 = inlined_call_operand.vmem [shape: f32[1,128], index: 2, kind: input, shape index: {}]
  %s3 = inlined_call_operand.hbm [shape: f32[128,128], index: 3, kind: input, shape index: {}]
  %s4 = inlined_call_operand.vmem [shape: f32[1,128], index: 4, kind: input, shape index: {}]
  %s5 = inlined_call_operand.vmem [shape: f32[1,128], index: 5, kind: input, shape index: {}]
  %s6 = inlined_call_operand.<no memory space> [shape: f32[1,1], index: 6, kind: input, shape index: {}]
  %s7 = inlined_call_operand.hbm [shape: f32[2,128], index: 7, kind: output, shape index: {}]
  %s8 = sld [smem:[#allocation0]]
  $region46: #{tpu_custom_call.1} parent=0
    _
  %s10 = ssub.s32 1, %s8
  %s11 = scalar_select 0, %s10, %s8
  %v12 = vstv %s6
  %13 = vst [vmem:[#allocation2] sm:$0x1] %v12
  $region1: #{tpu_custom_call.1} parent=0
    #allocation3 [shape = 'u8[8192]{0}', space=vmem, size = 0x2000, scoped, tag = 'input window, operand 1, single buffered']
    #allocation4 [shape = 's32[1]{0}', space=sflag, size = 0x4, scoped, tag = 'scoped memory for tpu_custom_call.1']
    #allocation5 [shape = 's32[1]{0}', space=sflag, size = 0x4, scoped, tag = 'scoped memory for tpu_custom_call.1']
    #allocation6 [shape = 'u8[65536]{0}', space=vmem, size = 0x10000, scoped, tag = 'input window, operand 3, single buffered']
    #allocation7 [shape = 's32[1]{0}', space=sflag, size = 0x4, scoped, tag = 'scoped memory for tpu_custom_call.1']
    #allocation8 [shape = 'u8[1024]{0}', space=vmem, size = 0x400, scoped, tag = 'output window, operand 0, single buffered']
    %14 = vsyncpa [#allocation4], 0
    %15 = vsyncpa [#allocation7], 0
    %16 = vsyncpa [#allocation5], 0
    // Predicated region
    $region2: #{tpu_custom_call.1} parent=1 // pred_check
      _
    $region3: #{tpu_custom_call.1} parent=1 // pred_check_branch
      %18 = sbr.rel (0) target = $region5
    $region4: #{tpu_custom_call.1} parent=1 // pred_region
      _
    $region5: #{tpu_custom_call.1} parent=1 // pred_fallthru
      _
    // Predicated region
    $region6: #{tpu_custom_call.1} parent=1 // pred_check
      _
    $region7: #{tpu_custom_call.1} parent=1 // pred_check_branch
      %20 = sbr.rel (0) target = $region9
    $region8: #{tpu_custom_call.1} parent=1 // pred_region
      %22 = vsyncadd [#allocation4], 0
      %s23 = sshll.u32 %s1, 4
      %s24 = int_to_ptr.hbm [resolvable:$true] %s23
      %s25 = sshll.u32 [#allocation3], 4
      %s26 = int_to_ptr.vmem [resolvable:$true] %s25
      %31 = dma.hbm_to_vmem [thread:$0]  %s24, 256, %s26, [#allocation4], 128, 128, 8
    $region9: #{tpu_custom_call.1} parent=1 // pred_fallthru
      _
    // Predicated region
    $region10: #{tpu_custom_call.1} parent=1 // pred_check
      _
    $region11: #{tpu_custom_call.1} parent=1 // pred_check_branch
      %33 = sbr.rel (0) target = $region13
    $region12: #{tpu_custom_call.1} parent=1 // pred_region
      _
    $region13: #{tpu_custom_call.1} parent=1 // pred_fallthru
      _
    // Predicated region
    $region14: #{tpu_custom_call.1} parent=1 // pred_check
      _
    $region15: #{tpu_custom_call.1} parent=1 // pred_check_branch
      %35 = sbr.rel (0) target = $region17
    $region16: #{tpu_custom_call.1} parent=1 // pred_region
      %37 = vsyncadd [#allocation7], 0
      %s38 = sshll.u32 %s3, 4
      %s39 = int_to_ptr.hbm [resolvable:$true] %s38
      %s40 = sshll.u32 [#allocation6], 4
      %s41 = int_to_ptr.vmem [resolvable:$true] %s40
      %46 = dma.hbm_to_vmem [thread:$0]  %s39, 2048, %s41, [#allocation7], 128, 128, 8
    $region17: #{tpu_custom_call.1} parent=1 // pred_fallthru
      _
    // Predicated region
    $region18: #{tpu_custom_call.1} parent=1 // pred_check
      _
    $region19: #{tpu_custom_call.1} parent=1 // pred_check_branch
      %48 = sbr.rel (0) target = $region21
    $region20: #{tpu_custom_call.1} parent=1 // pred_region
      _
    $region21: #{tpu_custom_call.1} parent=1 // pred_fallthru
      _
    // Predicated region
    $region22: #{tpu_custom_call.1} parent=1 // pred_check
      _
    $region23: #{tpu_custom_call.1} parent=1 // pred_check_branch
      %50 = sbr.rel (0) target = $region25
    $region24: #{tpu_custom_call.1} parent=1 // pred_region
      _
    $region25: #{tpu_custom_call.1} parent=1 // pred_fallthru
      _
    // Predicated region
    $region26: #{tpu_custom_call.1} parent=1 // pred_check
      _
    $region27: #{tpu_custom_call.1} parent=1 // pred_check_branch
      %52 = sbr.rel (0) target = $region29
    $region28: #{tpu_custom_call.1} parent=1 // pred_region
      _
    $region29: #{tpu_custom_call.1} parent=1 // pred_fallthru
      _
    // Predicated region
    $region30: #{tpu_custom_call.1} parent=1 // pred_check
      _
    $region31: #{tpu_custom_call.1} parent=1 // pred_check_branch
      %54 = sbr.rel (0) target = $region33
    $region32: #{tpu_custom_call.1} parent=1 // pred_region
      %56 = dma.done [#allocation4], 256
    $region33: #{tpu_custom_call.1} parent=1 // pred_fallthru
      _
    // Predicated region
    $region34: #{tpu_custom_call.1} parent=1 // pred_check
      _
    $region35: #{tpu_custom_call.1} parent=1 // pred_check_branch
      %58 = sbr.rel (0) target = $region37
    $region36: #{tpu_custom_call.1} parent=1 // pred_region
      %60 = dma.done [#allocation7], 2048
    $region37: #{tpu_custom_call.1} parent=1 // pred_fallthru
      _
    %v61 = vld [vmem:[%s0] sm:$0x3]
    %v62 = vld [vmem:[#allocation3] sm:$0xff]
    %v63 = vld [vmem:[#allocation3 + $0x8] sm:$0xff]
    %v64 = vld [vmem:[%s2] sm:$0x1]
    %v66 = vperm.slane %v64, 0
    %vm68 = vcmask 130048
    %v70 = vsel %vm68, %v61, 0
    %72 = vmatpush.msra.mxu0 0.0
    %73 = vmatpush.msra.mxu0 0.0
    %74 = vmatpush.msra.mxu0 0.0
    %75 = vmatpush.msra.mxu0 0.0
    %76 = vmatpush.msra.mxu0 0.0
    %77 = vmatpush.msra.mxu0 0.0
    %78 = vmatpush.msra.mxu0 0.0
    %79 = vmatpush.msra.mxu0 0.0
    %80 = vmatpush.msra.mxu0 0.0
    %81 = vmatpush.msra.mxu0 0.0
    %82 = vmatpush.msra.mxu0 0.0
    %83 = vmatpush.msra.mxu0 0.0
    %84 = vmatpush.msra.mxu0 0.0
    %85 = vmatpush.msra.mxu0 0.0
    %86 = vmatpush.msra.mxu0 %v63
    %87 = vmatpush.msra.mxu0 %v62
    %88 = vmatmul.f32.gmra.mxu0 %v70
    %v89 = vpop.f32.mrf.mxu0
    %v90 = vadd.f32 %v66, %v89
    %91 = vdwg.mxu0
    %v92 = vtanh.pop %v90
    %v93 = vld [vmem:[#allocation6] sm:$0xff]
    %v94 = vld [vmem:[#allocation6 + $0x8] sm:$0xff]
    %v95 = vld [vmem:[#allocation6 + $0x10] sm:$0xff]
    %v96 = vld [vmem:[#allocation6 + $0x18] sm:$0xff]
    %v97 = vld [vmem:[#allocation6 + $0x20] sm:$0xff]
    %v98 = vld [vmem:[#allocation6 + $0x28] sm:$0xff]
    %v99 = vld [vmem:[#allocation6 + $0x30] sm:$0xff]
    %v100 = vld [vmem:[#allocation6 + $0x38] sm:$0xff]
    %v101 = vld [vmem:[#allocation6 + $0x40] sm:$0xff]
    %v102 = vld [vmem:[#allocation6 + $0x48] sm:$0xff]
    %v103 = vld [vmem:[#allocation6 + $0x50] sm:$0xff]
    %v104 = vld [vmem:[#allocation6 + $0x58] sm:$0xff]
    %v105 = vld [vmem:[#allocation6 + $0x60] sm:$0xff]
    %v106 = vld [vmem:[#allocation6 + $0x68] sm:$0xff]
    %v107 = vld [vmem:[#allocation6 + $0x70] sm:$0xff]
    %v108 = vld [vmem:[#allocation6 + $0x78] sm:$0xff]
    %v109 = vld [vmem:[%s4] sm:$0x1]
    %v111 = vperm.slane %v109, 0
    %113 = vmatpush.msra.mxu0 %v108
    %114 = vmatpush.msra.mxu0 %v107
    %115 = vmatpush.msra.mxu0 %v106
    %116 = vmatpush.msra.mxu0 %v105
    %117 = vmatpush.msra.mxu0 %v104
    %118 = vmatpush.msra.mxu0 %v103
    %119 = vmatpush.msra.mxu0 %v102
    %120 = vmatpush.msra.mxu0 %v101
    %121 = vmatpush.msra.mxu0 %v100
    %122 = vmatpush.msra.mxu0 %v99
    %123 = vmatpush.msra.mxu0 %v98
    %124 = vmatpush.msra.mxu0 %v97
    %125 = vmatpush.msra.mxu0 %v96
    %126 = vmatpush.msra.mxu0 %v95
    %127 = vmatpush.msra.mxu0 %v94
    %128 = vmatpush.msra.mxu0 %v93
    %129 = vmatmul.f32.gmra.mxu0 %v92
    %v130 = vpop.f32.mrf.mxu0
    %v131 = vadd.f32 %v111, %v130
    %132 = vdwg.mxu0
    %v133 = vtanh.pop %v131
    %v134 = vld [vmem:[%s5] sm:$0x1]
    %v136 = vperm.slane %v134, 0
    %v138 = vmul.f32 %v133, %v136
    %vm139 = vcmask 1041408
    %v140 = vsel %vm139, %v138, 0.0
    %141 = vadd.xlane.f32.xlu0 %v140
    %v142 = vpop.xlane.xlu0 %141
    %v143 = vld [vmem:[#allocation2] sm:$0x1]
    %v145 = vperm.slane %v143, 0
    %v147 = vadd.f32 %v142, %v145
    %v148 = vlaneseq
    %v149 = vand.u32 %v148, 127
    %vm150 = vcmp.lt.s32.totalorder %v149, 64
    %152 = vset.pattern.permute.xlu0 0
    %153 = vperm.xlu0 %152, %v147
    %v154 = vpop.permute.xlu0 %153
    %v156 = vsel %vm150, %v133, %v154
    %157 = vst [vmem:[#allocation8] sm:$0x3] %v156
    // Predicated region
    $region38: #{tpu_custom_call.1} parent=1 // pred_check
      _
    $region39: #{tpu_custom_call.1} parent=1 // pred_check_branch
      %159 = sbr.rel (0) target = $region41
    $region40: #{tpu_custom_call.1} parent=1 // pred_region
      %161 = vsyncadd [#allocation5], 0
      %s163 = sshll.u32 [#allocation8], 4
      %s164 = int_to_ptr.vmem [resolvable:$true] %s163
      %s165 = sshll.u32 %s7, 4
      %s166 = int_to_ptr.hbm [resolvable:$true] %s165
      %168 = dma.vmem_to_hbm [thread:$0]  %s164, 32, %s166, [#allocation5]
    $region41: #{tpu_custom_call.1} parent=1 // pred_fallthru
      _
    // Predicated region
    $region42: #{tpu_custom_call.1} parent=1 // pred_check
      _
    $region43: #{tpu_custom_call.1} parent=1 // pred_check_branch
      %170 = sbr.rel (0) target = $region45
    $region44: #{tpu_custom_call.1} parent=1 // pred_region
      %172 = dma.done [#allocation5], 32
    $region45: #{tpu_custom_call.1} parent=1 // pred_fallthru
      _
    %173 = vsyncpa [#allocation4], 1
    %174 = vsyncpa [#allocation7], 1
    %175 = vsyncpa [#allocation5], 1

</llo_original>
